<compile_context>
chip_gen: v7x
topology: tpu7x:2x2x1
jax: 0.10.0
libtpu: 0.0.40
codegen_flags: <defaults>
</compile_context>

<pallas_src>
import jax
import jax.numpy as jnp
from jax.experimental import pallas as pl
from jax.experimental.pallas import tpu as pltpu

LANE = 128      # lane width: last-dim padding target
SUBLANE = 8     # sublane width: row padding target


# ----------------------------- Pallas kernel -------------------------------

def fused_forward_kernel(x_ref, w_ref, b_ref, out_ref):
    """Fused CLS-row encoder stand-in + two shared hidden layers + classifier.

    x_ref : (Bp, Hp)            CLS-row embeddings, zero-padded rows/lanes
    w_ref : (Hp, 2*Hp + Lp)     [w_enc | w_hidden | w_cls] packed along lanes
    b_ref : (1,  2*Hp + Lp)     [b_enc | b_hidden | b_cls] packed along lanes
    out_ref: (Bp, Lp)           logits (real values in [:B, :L])
    """
    Hp = x_ref.shape[1]
    Lp = out_ref.shape[1]

    # Static, lane-aligned slices of the packed parameter blocks.
    w_enc = w_ref[:, 0:Hp]
    w_hid = w_ref[:, Hp:2 * Hp]
    w_cls = w_ref[:, 2 * Hp:2 * Hp + Lp]
    b_enc = b_ref[:, 0:Hp]
    b_hid = b_ref[:, Hp:2 * Hp]
    b_cls = b_ref[:, 2 * Hp:2 * Hp + Lp]

    # Encoder stand-in on CLS rows only: tanh(emb_cls @ W_enc + b_enc).
    h = jnp.tanh(jnp.dot(x_ref[...], w_enc,
                         preferred_element_type=jnp.float32) + b_enc)

    # Head (dropout p=0.1 is identity at inference); same hidden weights twice.
    x = jnp.tanh(jnp.dot(h, w_hid,
                         preferred_element_type=jnp.float32) + b_hid)
    x = jnp.tanh(jnp.dot(x, w_hid,
                         preferred_element_type=jnp.float32) + b_hid)

    # Classifier — lane-dense (Bp, Lp) store.
    out_ref[...] = jnp.dot(x, w_cls,
                           preferred_element_type=jnp.float32) + b_cls


# ----------------------- one-time parameter packing --------------------------

def prepare_padded_params(params):
    """Pad + pack parameters once; reuse the result for every forward call."""
    H = params["tok_emb"].shape[1]
    L = params["w_cls"].shape[1]
    Hp = pl.cdiv(H, LANE) * LANE        # 32  -> 128
    Lp = pl.cdiv(L, LANE) * LANE        # 6   -> 128

    w = jnp.zeros((Hp, 2 * Hp + Lp), jnp.float32)
    w = w.at[:H, 0:H].set(params["w_enc"].astype(jnp.float32))
    w = w.at[:H, Hp:Hp + H].set(params["w_hidden"].astype(jnp.float32))
    w = w.at[:H, 2 * Hp:2 * Hp + L].set(params["w_cls"].astype(jnp.float32))

    b = jnp.zeros((1, 2 * Hp + Lp), jnp.float32)
    b = b.at[:, 0:H].set(params["b_enc"].astype(jnp.float32))
    b = b.at[:, Hp:Hp + H].set(params["b_hidden"].astype(jnp.float32))
    b = b.at[:, 2 * Hp:2 * Hp + L].set(params["b_cls"].astype(jnp.float32))

    return {
        "tok_emb": params["tok_emb"].astype(jnp.float32),
        "pos_emb": params["pos_emb"].astype(jnp.float32),
        "w_packed": w,
        "b_packed": b,
        "H": H, "L": L, "Hp": Hp, "Lp": Lp,
    }


# ------------------------------- forward ------------------------------------

def emotion_classifier_forward(padded, input_ids, attention_mask):
    """Forward pass using pre-padded/packed params. attention_mask unused (see TODO)."""
    del attention_mask  # CLS-only encoder path; CLS is asserted unmasked in __main__.
    B = input_ids.shape[0]
    H, L, Hp, Lp = padded["H"], padded["L"], padded["Hp"], padded["Lp"]
    Bp = max(SUBLANE, pl.cdiv(B, SUBLANE) * SUBLANE)   # 2 -> 8 (sublane multiple)

    # Glue: gather only the CLS token embedding (position 0) + its pos-emb,
    # then place it in a zero-padded (Bp, Hp) slab (padding exact in f32).
    cls_emb = padded["tok_emb"][input_ids[:, 0]] + padded["pos_emb"][0][None, :]
    x = jnp.zeros((Bp, Hp), jnp.float32).at[:B, :H].set(cls_emb)

    flops = 2 * Bp * Hp * (3 * Hp + Lp)                       # 4 matmuls
    transcendentals = 3 * Bp * Hp                             # 3 tanh layers
    bytes_accessed = 4 * (x.size + padded["w_packed"].size
                          + padded["b_packed"].size + Bp * Lp)

    logits_padded = pl.pallas_call(
        fused_forward_kernel,
        out_shape=jax.ShapeDtypeStruct((Bp, Lp), jnp.float32),
        in_specs=[pl.BlockSpec(memory_space=pltpu.MemorySpace.VMEM)] * 3,
        out_specs=pl.BlockSpec(memory_space=pltpu.MemorySpace.VMEM),
        cost_estimate=pl.CostEstimate(flops=flops,
                                      transcendentals=transcendentals,
                                      bytes_accessed=bytes_accessed),
    )(x, padded["w_packed"], padded["b_packed"])

    return logits_padded[:B, :L]                               # (B, L)


# --------------------------- reference (pure JAX) ---------------------------

def reference_forward(params, input_ids, attention_mask):
    cls_emb = params["tok_emb"][input_ids[:, 0]] + params["pos_emb"][0][None, :]
    h = jnp.tanh(cls_emb @ params["w_enc"] + params["b_enc"])
    x = jnp.tanh(h @ params["w_hidden"] + params["b_hidden"])
    x = jnp.tanh(x @ params["w_hidden"] + params["b_hidden"])
    return x @ params["w_cls"] + params["b_cls"]


# --------------------------------- main -------------------------------------

if __name__ == "__main__":
    B, S, H, VOCAB, NUM_LABELS = 2, 8, 32, 50, 6

    key = jax.random.PRNGKey(0)
    ks = jax.random.split(key, 8)

    params = {
        "tok_emb":  jax.random.normal(ks[0], (VOCAB, H), jnp.float32) * 0.02,
        "pos_emb":  jax.random.normal(ks[1], (S, H), jnp.float32) * 0.02,
        "w_enc":    jax.random.normal(ks[2], (H, H), jnp.float32) * (1.0 / H ** 0.5),
        "b_enc":    jnp.zeros((1, H), jnp.float32),
        "w_hidden": jax.random.normal(ks[3], (H, H), jnp.float32) * (1.0 / H ** 0.5),
        "b_hidden": jax.random.normal(ks[4], (1, H), jnp.float32) * 0.01,
        "w_cls":    jax.random.normal(ks[5], (H, NUM_LABELS), jnp.float32) * (1.0 / H ** 0.5),
        "b_cls":    jax.random.normal(ks[6], (1, NUM_LABELS), jnp.float32) * 0.01,
    }

    input_ids = jax.random.randint(ks[7], (B, S), 0, VOCAB, dtype=jnp.int32)
    attention_mask = jnp.ones((B, S), dtype=jnp.int32).at[1, 6:].set(0)  # some padding

    # CLS-only encoder path assumes the CLS position is never masked
    # (eager-only check; keep it outside any jit).
    assert bool(jnp.all(attention_mask[:, 0] == 1)), "CLS token must be unmasked"

    # One-time parameter padding/packing (cached; not re-run per forward call).
    padded = prepare_padded_params(params)
    padded = jax.tree_util.tree_map(
        lambda v: jax.block_until_ready(v) if isinstance(v, jax.Array) else v, padded)

    logits = emotion_classifier_forward(padded, input_ids, attention_mask)
    logits = jax.block_until_ready(logits)

    ref = reference_forward(params, input_ids, attention_mask)
    assert logits.shape == (B, NUM_LABELS)
    assert jnp.allclose(logits, ref, atol=1e-5, rtol=1e-5), "mismatch vs reference"

    print("KERNEL_OK")
</pallas_src>

<mosaic_0001>
module attributes {stable_mosaic.version = 11 : i64} {
  func.func @fused_forward_kernel(%arg0: memref<8x128xf32, #tpu.memory_space<vmem>>, %arg1: memref<128x384xf32, #tpu.memory_space<vmem>>, %arg2: memref<1x384xf32, #tpu.memory_space<vmem>>, %arg3: memref<8x128xf32, #tpu.memory_space<vmem>>) attributes {dimension_semantics = [], scalar_prefetch = 0 : i64, scratch_operands = 0 : i64, tpu.core_type = #tpu.core_type<tc>} {
    %c0 = arith.constant 0 : index
    %c0_0 = arith.constant 0 : index
    %0 = vector.load %arg1[%c0, %c0_0] : memref<128x384xf32, #tpu.memory_space<vmem>>, vector<128x128xf32>
    %c0_1 = arith.constant 0 : index
    %c128 = arith.constant 128 : index
    %1 = vector.load %arg1[%c0_1, %c128] : memref<128x384xf32, #tpu.memory_space<vmem>>, vector<128x128xf32>
    %c0_2 = arith.constant 0 : index
    %c256 = arith.constant 256 : index
    %2 = vector.load %arg1[%c0_2, %c256] : memref<128x384xf32, #tpu.memory_space<vmem>>, vector<128x128xf32>
    %c0_3 = arith.constant 0 : index
    %c0_4 = arith.constant 0 : index
    %3 = vector.load %arg2[%c0_3, %c0_4] : memref<1x384xf32, #tpu.memory_space<vmem>>, vector<1x128xf32>
    %c0_5 = arith.constant 0 : index
    %c128_6 = arith.constant 128 : index
    %4 = vector.load %arg2[%c0_5, %c128_6] : memref<1x384xf32, #tpu.memory_space<vmem>>, vector<1x128xf32>
    %c0_7 = arith.constant 0 : index
    %c256_8 = arith.constant 256 : index
    %5 = vector.load %arg2[%c0_7, %c256_8] : memref<1x384xf32, #tpu.memory_space<vmem>>, vector<1x128xf32>
    %c0_9 = arith.constant 0 : index
    %c0_10 = arith.constant 0 : index
    %6 = vector.load %arg0[%c0_9, %c0_10] : memref<8x128xf32, #tpu.memory_space<vmem>>, vector<8x128xf32>
    %cst = arith.constant dense<0.000000e+00> : vector<8x128xf32>
    %7 = tpu.matmul %6, %0, %cst {dimension_numbers = #tpu.dot_dimension_numbers<[1], [0], [0], [1], [0, 0, 1, 1], [], []>} : vector<8x128xf32>, vector<128x128xf32>, vector<8x128xf32> -> vector<8x128xf32>
    %8 = vector.broadcast %3 : vector<1x128xf32> to vector<8x128xf32>
    %9 = arith.addf %7, %8 : vector<8x128xf32>
    %10 = math.tanh %9 : vector<8x128xf32>
    %cst_11 = arith.constant dense<0.000000e+00> : vector<8x128xf32>
    %11 = tpu.matmul %10, %1, %cst_11 {dimension_numbers = #tpu.dot_dimension_numbers<[1], [0], [0], [1], [0, 0, 1, 1], [], []>} : vector<8x128xf32>, vector<128x128xf32>, vector<8x128xf32> -> vector<8x128xf32>
    %12 = vector.broadcast %4 : vector<1x128xf32> to vector<8x128xf32>
    %13 = arith.addf %11, %12 : vector<8x128xf32>
    %14 = math.tanh %13 : vector<8x128xf32>
    %cst_12 = arith.constant dense<0.000000e+00> : vector<8x128xf32>
    %15 = tpu.matmul %14, %1, %cst_12 {dimension_numbers = #tpu.dot_dimension_numbers<[1], [0], [0], [1], [0, 0, 1, 1], [], []>} : vector<8x128xf32>, vector<128x128xf32>, vector<8x128xf32> -> vector<8x128xf32>
    %16 = vector.broadcast %4 : vector<1x128xf32> to vector<8x128xf32>
    %17 = arith.addf %15, %16 : vector<8x128xf32>
    %18 = math.tanh %17 : vector<8x128xf32>
    %cst_13 = arith.constant dense<0.000000e+00> : vector<8x128xf32>
    %19 = tpu.matmul %18, %2, %cst_13 {dimension_numbers = #tpu.dot_dimension_numbers<[1], [0], [0], [1], [0, 0, 1, 1], [], []>} : vector<8x128xf32>, vector<128x128xf32>, vector<8x128xf32> -> vector<8x128xf32>
    %20 = vector.broadcast %5 : vector<1x128xf32> to vector<8x128xf32>
    %21 = arith.addf %19, %20 : vector<8x128xf32>
    %c0_14 = arith.constant 0 : index
    %c0_15 = arith.constant 0 : index
    %22 = vector.load %arg3[%c0_14, %c0_15] : memref<8x128xf32, #tpu.memory_space<vmem>>, vector<8x128xf32>
    tpu.vector_store %arg3[%c0_14, %c0_15], %21 {strides = array<i32>} : memref<8x128xf32, #tpu.memory_space<vmem>>, vector<8x128xf32>,
    return
  }
}

</mosaic_0001>

<llo_original>
// kernel: tpu_custom_call.1
$region0: #{tpu_custom_call.1}
  #allocation0 [shape = 'u32[]', space=smem, size = 0x4, offset = 0x4, fixed_abs, tag = 'smem constant byte address 0x4 - core index']
  #allocation1 [shape = 'u32[144,128]{1,0:T(1,128)}', space=vmem, size = 0x12000, scoped, tag = 'internal scratch']
  %s0 = inlined_call_operand.hbm [shape: f32[8,128], index: 0, kind: input, shape index: {}]
  %s1 = inlined_call_operand.hbm [shape: f32[128,384], index: 1, kind: input, shape index: {}]
  %s2 = inlined_call_operand.vmem [shape: f32[1,384], index: 2, kind: input, shape index: {}]
  %s3 = inlined_call_operand.hbm [shape: f32[8,128], index: 3, kind: output, shape index: {}]
  %s4 = sld [smem:[#allocation0]]
  $region30: #{tpu_custom_call.1} parent=0
    _
  %s6 = ssub.s32 1, %s4
  %s7 = scalar_select 0, %s6, %s4
  $region1: #{tpu_custom_call.1} parent=0
    #allocation2 [shape = 'u8[4096]{0}', space=vmem, size = 0x1000, scoped, tag = 'input window, operand 0, single buffered']
    #allocation3 [shape = 's32[1]{0}', space=sflag, size = 0x4, scoped, tag = 'scoped memory for tpu_custom_call.1']
    #allocation4 [shape = 's32[1]{0}', space=sflag, size = 0x4, scoped, tag = 'scoped memory for tpu_custom_call.1']
    #allocation5 [shape = 'u8[196608]{0}', space=vmem, size = 0x30000, scoped, tag = 'input window, operand 1, single buffered']
    #allocation6 [shape = 's32[1]{0}', space=sflag, size = 0x4, scoped, tag = 'scoped memory for tpu_custom_call.1']
    #allocation7 [shape = 'u8[4096]{0}', space=vmem, size = 0x1000, scoped, tag = 'output window, operand 0, single buffered']
    %8 = vsyncpa [#allocation3], 0
    %9 = vsyncpa [#allocation6], 0
    %10 = vsyncpa [#allocation4], 0
    // Predicated region
    $region2: #{tpu_custom_call.1} parent=1 // pred_check
      _
    $region3: #{tpu_custom_call.1} parent=1 // pred_check_branch
      %12 = sbr.rel (0) target = $region5
    $region4: #{tpu_custom_call.1} parent=1 // pred_region
      %s14 = ssub.s32 128, 128
      %15 = vsyncadd [#allocation3], %s14
      %s17 = sshll.u32 [#allocation2], 4
      %s18 = int_to_ptr.vmem [resolvable:$true] %s17
      %20 = dma.hbm_to_vmem [thread:$0]  %s0, 128, %s18, [#allocation3]
    $region5: #{tpu_custom_call.1} parent=1 // pred_fallthru
      _
    // Predicated region
    $region6: #{tpu_custom_call.1} parent=1 // pred_check
      _
    $region7: #{tpu_custom_call.1} parent=1 // pred_check_branch
      %22 = sbr.rel (0) target = $region9
    $region8: #{tpu_custom_call.1} parent=1 // pred_region
      %s24 = ssub.s32 6144, 6144
      %25 = vsyncadd [#allocation6], %s24
      %s26 = sshll.u32 [#allocation5], 4
      %s27 = int_to_ptr.vmem [resolvable:$true] %s26
      %32 = dma.hbm_to_vmem [thread:$0]  %s1, 6144, %s27, [#allocation6], 384, 384, 24
    $region9: #{tpu_custom_call.1} parent=1 // pred_fallthru
      _
    // Predicated region
    $region10: #{tpu_custom_call.1} parent=1 // pred_check
      _
    $region11: #{tpu_custom_call.1} parent=1 // pred_check_branch
      %34 = sbr.rel (0) target = $region13
    $region12: #{tpu_custom_call.1} parent=1 // pred_region
      _
    $region13: #{tpu_custom_call.1} parent=1 // pred_fallthru
      _
    // Predicated region
    $region14: #{tpu_custom_call.1} parent=1 // pred_check
      _
    $region15: #{tpu_custom_call.1} parent=1 // pred_check_branch
      %36 = sbr.rel (0) target = $region17
    $region16: #{tpu_custom_call.1} parent=1 // pred_region
      %37 = dma.done [#allocation3], 128
    $region17: #{tpu_custom_call.1} parent=1 // pred_fallthru
      _
    // Predicated region
    $region18: #{tpu_custom_call.1} parent=1 // pred_check
      _
    $region19: #{tpu_custom_call.1} parent=1 // pred_check_branch
      %39 = sbr.rel (0) target = $region21
    $region20: #{tpu_custom_call.1} parent=1 // pred_region
      %40 = dma.done [#allocation6], 6144
    $region21: #{tpu_custom_call.1} parent=1 // pred_fallthru
      _
    %v41 = vld [vmem:[#allocation5] sm:$0xff]
    %v42 = vld [vmem:[#allocation5 + $0x18] sm:$0xff]
    %v43 = vld [vmem:[#allocation5 + $0x30] sm:$0xff]
    %v44 = vld [vmem:[#allocation5 + $0x48] sm:$0xff]
    %v45 = vld [vmem:[#allocation5 + $0x60] sm:$0xff]
    %v46 = vld [vmem:[#allocation5 + $0x78] sm:$0xff]
    %v47 = vld [vmem:[#allocation5 + $0x90] sm:$0xff]
    %v48 = vld [vmem:[#allocation5 + $0xa8] sm:$0xff]
    %v49 = vld [vmem:[#allocation5 + $0xc0] sm:$0xff]
    %v50 = vld [vmem:[#allocation5 + $0xd8] sm:$0xff]
    %v51 = vld [vmem:[#allocation5 + $0xf0] sm:$0xff]
    %v52 = vld [vmem:[#allocation5 + $0x108] sm:$0xff]
    %v53 = vld [vmem:[#allocation5 + $0x120] sm:$0xff]
    %v54 = vld [vmem:[#allocation5 + $0x138] sm:$0xff]
    %v55 = vld [vmem:[#allocation5 + $0x150] sm:$0xff]
    %v56 = vld [vmem:[#allocation5 + $0x168] sm:$0xff]
    %v57 = vld [vmem:[#allocation5 + $0x8] sm:$0xff]
    %v58 = vld [vmem:[#allocation5 + $0x20] sm:$0xff]
    %v59 = vld [vmem:[#allocation5 + $0x38] sm:$0xff]
    %v60 = vld [vmem:[#allocation5 + $0x50] sm:$0xff]
    %v61 = vld [vmem:[#allocation5 + $0x68] sm:$0xff]
    %v62 = vld [vmem:[#allocation5 + $0x80] sm:$0xff]
    %v63 = vld [vmem:[#allocation5 + $0x98] sm:$0xff]
    %v64 = vld [vmem:[#allocation5 + $0xb0] sm:$0xff]
    %v65 = vld [vmem:[#allocation5 + $0xc8] sm:$0xff]
    %v66 = vld [vmem:[#allocation5 + $0xe0] sm:$0xff]
    %v67 = vld [vmem:[#allocation5 + $0xf8] sm:$0xff]
    %v68 = vld [vmem:[#allocation5 + $0x110] sm:$0xff]
    %v69 = vld [vmem:[#allocation5 + $0x128] sm:$0xff]
    %v70 = vld [vmem:[#allocation5 + $0x140] sm:$0xff]
    %v71 = vld [vmem:[#allocation5 + $0x158] sm:$0xff]
    %v72 = vld [vmem:[#allocation5 + $0x170] sm:$0xff]
    %v73 = vld [vmem:[#allocation5 + $0x10] sm:$0xff]
    %v74 = vld [vmem:[#allocation5 + $0x28] sm:$0xff]
    %v75 = vld [vmem:[#allocation5 + $0x40] sm:$0xff]
    %v76 = vld [vmem:[#allocation5 + $0x58] sm:$0xff]
    %v77 = vld [vmem:[#allocation5 + $0x70] sm:$0xff]
    %v78 = vld [vmem:[#allocation5 + $0x88] sm:$0xff]
    %v79 = vld [vmem:[#allocation5 + $0xa0] sm:$0xff]
    %v80 = vld [vmem:[#allocation5 + $0xb8] sm:$0xff]
    %v81 = vld [vmem:[#allocation5 + $0xd0] sm:$0xff]
    %v82 = vld [vmem:[#allocation5 + $0xe8] sm:$0xff]
    %v83 = vld [vmem:[#allocation5 + $0x100] sm:$0xff]
    %v84 = vld [vmem:[#allocation5 + $0x118] sm:$0xff]
    %v85 = vld [vmem:[#allocation5 + $0x130] sm:$0xff]
    %v86 = vld [vmem:[#allocation5 + $0x148] sm:$0xff]
    %v87 = vld [vmem:[#allocation5 + $0x160] sm:$0xff]
    %v88 = vld [vmem:[#allocation5 + $0x178] sm:$0xff]
    %v89 = vld [vmem:[%s2] sm:$0x1]
    %v90 = vld [vmem:[%s2 + $0x1] sm:$0x1]
    %v91 = vld [vmem:[%s2 + $0x2] sm:$0x1]
    %v92 = vld [vmem:[#allocation2] sm:$0xff]
    %v94 = vlaneseq
    %v95 = vshrl.u32 %v94, 7
    %v96 = vsub.s32 0, %v95
    %v97 = vrot.slane %v89, %v96
    %99 = vmatprep.subr.mxu0 0.0
    %100 = vmatpush1.msra.mxu0 %v41
    %101 = vmatprep.subr.mxu0 0.0
    %102 = vmatpush1.msra.mxu0 %v42
    %103 = vmatprep.subr.mxu0 0.0
    %104 = vmatpush1.msra.mxu0 %v43
    %105 = vmatprep.subr.mxu0 0.0
    %106 = vmatpush1.msra.mxu0 %v44
    %107 = vmatprep.subr.mxu0 0.0
    %108 = vmatpush1.msra.mxu0 %v45
    %109 = vmatprep.subr.mxu0 0.0
    %110 = vmatpush1.msra.mxu0 %v46
    %111 = vmatprep.subr.mxu0 0.0
    %112 = vmatpush1.msra.mxu0 %v47
    %113 = vmatprep.subr.mxu0 0.0
    %114 = vmatpush1.msra.mxu0 %v48
    %115 = vmatprep.subr.mxu0 0.0
    %116 = vmatpush1.msra.mxu0 %v49
    %117 = vmatprep.subr.mxu0 0.0
    %118 = vmatpush1.msra.mxu0 %v50
    %119 = vmatprep.subr.mxu0 0.0
    %120 = vmatpush1.msra.mxu0 %v51
    %121 = vmatprep.subr.mxu0 0.0
    %122 = vmatpush1.msra.mxu0 %v52
    %123 = vmatprep.subr.mxu0 0.0
    %124 = vmatpush1.msra.mxu0 %v53
    %125 = vmatprep.subr.mxu0 0.0
    %126 = vmatpush1.msra.mxu0 %v54
    %127 = vmatprep.subr.mxu0 0.0
    %128 = vmatpush1.msra.mxu0 %v55
    %129 = vmatprep.subr.mxu0 0.0
    %130 = vmatpush1.msra.mxu0 %v56
    %131 = vmatprep.subr.mxu0 0.0
    %132 = vmatpush1.msra.mxu0 0.0
    %133 = vmatprep.subr.mxu0 0.0
    %134 = vmatpush1.msra.mxu0 0.0
    %135 = vmatprep.subr.mxu0 0.0
    %136 = vmatpush1.msra.mxu0 0.0
    %137 = vmatprep.subr.mxu0 0.0
    %138 = vmatpush1.msra.mxu0 0.0
    %139 = vmatprep.subr.mxu0 0.0
    %140 = vmatpush1.msra.mxu0 0.0
    %141 = vmatprep.subr.mxu0 0.0
    %142 = vmatpush1.msra.mxu0 0.0
    %143 = vmatprep.subr.mxu0 0.0
    %144 = vmatpush1.msra.mxu0 0.0
    %145 = vmatprep.subr.mxu0 0.0
    %146 = vmatpush1.msra.mxu0 0.0
    %147 = vmatprep.subr.mxu0 0.0
    %148 = vmatpush1.msra.mxu0 0.0
    %149 = vmatprep.subr.mxu0 0.0
    %150 = vmatpush1.msra.mxu0 0.0
    %151 = vmatprep.subr.mxu0 0.0
    %152 = vmatpush1.msra.mxu0 0.0
    %153 = vmatprep.subr.mxu0 0.0
    %154 = vmatpush1.msra.mxu0 0.0
    %155 = vmatprep.subr.mxu0 0.0
    %156 = vmatpush1.msra.mxu0 0.0
    %157 = vmatprep.subr.mxu0 0.0
    %158 = vmatpush1.msra.mxu0 0.0
    %159 = vmatprep.subr.mxu0 0.0
    %160 = vmatpush1.msra.mxu0 0.0
    %161 = vmatprep.subr.mxu0 0.0
    %162 = vmatpush1.msra.mxu0 0.0
    %163 = vmatprep.mubr.f32.mxu0 0.0
    %164 = vmatmul.mubr.f32.gmra.mrb[0].mxu0 %v92
    %v165 = vpop.f32.mrb[0].mxu0
    %v166 = vadd.f32 %v97, %v165
    %v167 = vpop.f32.mrb[0].mxu0
    %168 = vdwg.mxu0
    %v169 = vtanh.pop %v166
    %v171 = vlaneseq
    %v172 = vshrl.u32 %v171, 7
    %v173 = vsub.s32 0, %v172
    %v174 = vrot.slane %v90, %v173
    %176 = vmatprep.subr.mxu0 0.0
    %177 = vmatpush1.msra.mxu0 %v57
    %178 = vmatprep.subr.mxu0 0.0
    %179 = vmatpush1.msra.mxu0 %v58
    %180 = vmatprep.subr.mxu0 0.0
    %181 = vmatpush1.msra.mxu0 %v59
    %182 = vmatprep.subr.mxu0 0.0
    %183 = vmatpush1.msra.mxu0 %v60
    %184 = vmatprep.subr.mxu0 0.0
    %185 = vmatpush1.msra.mxu0 %v61
    %186 = vmatprep.subr.mxu0 0.0
    %187 = vmatpush1.msra.mxu0 %v62
    %188 = vmatprep.subr.mxu0 0.0
    %189 = vmatpush1.msra.mxu0 %v63
    %190 = vmatprep.subr.mxu0 0.0
    %191 = vmatpush1.msra.mxu0 %v64
    %192 = vmatprep.subr.mxu0 0.0
    %193 = vmatpush1.msra.mxu0 %v65
    %194 = vmatprep.subr.mxu0 0.0
    %195 = vmatpush1.msra.mxu0 %v66
    %196 = vmatprep.subr.mxu0 0.0
    %197 = vmatpush1.msra.mxu0 %v67
    %198 = vmatprep.subr.mxu0 0.0
    %199 = vmatpush1.msra.mxu0 %v68
    %200 = vmatprep.subr.mxu0 0.0
    %201 = vmatpush1.msra.mxu0 %v69
    %202 = vmatprep.subr.mxu0 0.0
    %203 = vmatpush1.msra.mxu0 %v70
    %204 = vmatprep.subr.mxu0 0.0
    %205 = vmatpush1.msra.mxu0 %v71
    %206 = vmatprep.subr.mxu0 0.0
    %207 = vmatpush1.msra.mxu0 %v72
    %208 = vmatprep.subr.mxu0 0.0
    %209 = vmatpush1.msra.mxu0 0.0
    %210 = vmatprep.subr.mxu0 0.0
    %211 = vmatpush1.msra.mxu0 0.0
    %212 = vmatprep.subr.mxu0 0.0
    %213 = vmatpush1.msra.mxu0 0.0
    %214 = vmatprep.subr.mxu0 0.0
    %215 = vmatpush1.msra.mxu0 0.0
    %216 = vmatprep.subr.mxu0 0.0
    %217 = vmatpush1.msra.mxu0 0.0
    %218 = vmatprep.subr.mxu0 0.0
    %219 = vmatpush1.msra.mxu0 0.0
    %220 = vmatprep.subr.mxu0 0.0
    %221 = vmatpush1.msra.mxu0 0.0
    %222 = vmatprep.subr.mxu0 0.0
    %223 = vmatpush1.msra.mxu0 0.0
    %224 = vmatprep.subr.mxu0 0.0
    %225 = vmatpush1.msra.mxu0 0.0
    %226 = vmatprep.subr.mxu0 0.0
    %227 = vmatpush1.msra.mxu0 0.0
    %228 = vmatprep.subr.mxu0 0.0
    %229 = vmatpush1.msra.mxu0 0.0
    %230 = vmatprep.subr.mxu0 0.0
    %231 = vmatpush1.msra.mxu0 0.0
    %232 = vmatprep.subr.mxu0 0.0
    %233 = vmatpush1.msra.mxu0 0.0
    %234 = vmatprep.subr.mxu0 0.0
    %235 = vmatpush1.msra.mxu0 0.0
    %236 = vmatprep.subr.mxu0 0.0
    %237 = vmatpush1.msra.mxu0 0.0
    %238 = vmatprep.subr.mxu0 0.0
    %239 = vmatpush1.msra.mxu0 0.0
    %240 = vmatprep.mubr.f32.mxu0 0.0
    %241 = vmatmul.mubr.f32.gmra.mrb[0].mxu0 %v169
    %v242 = vpop.f32.mrb[0].mxu0
    %v243 = vadd.f32 %v174, %v242
    %v244 = vpop.f32.mrb[0].mxu0
    %245 = vdwg.mxu0
    %v246 = vtanh.pop %v243
    %247 = vmatprep.subr.mxu0 0.0
    %248 = vmatpush1.msra.mxu0 %v57
    %249 = vmatprep.subr.mxu0 0.0
    %250 = vmatpush1.msra.mxu0 %v58
    %251 = vmatprep.subr.mxu0 0.0
    %252 = vmatpush1.msra.mxu0 %v59
    %253 = vmatprep.subr.mxu0 0.0
    %254 = vmatpush1.msra.mxu0 %v60
    %255 = vmatprep.subr.mxu0 0.0
    %256 = vmatpush1.msra.mxu0 %v61
    %257 = vmatprep.subr.mxu0 0.0
    %258 = vmatpush1.msra.mxu0 %v62
    %259 = vmatprep.subr.mxu0 0.0
    %260 = vmatpush1.msra.mxu0 %v63
    %261 = vmatprep.subr.mxu0 0.0
    %262 = vmatpush1.msra.mxu0 %v64
    %263 = vmatprep.subr.mxu0 0.0
    %264 = vmatpush1.msra.mxu0 %v65
    %265 = vmatprep.subr.mxu0 0.0
    %266 = vmatpush1.msra.mxu0 %v66
    %267 = vmatprep.subr.mxu0 0.0
    %268 = vmatpush1.msra.mxu0 %v67
    %269 = vmatprep.subr.mxu0 0.0
    %270 = vmatpush1.msra.mxu0 %v68
    %271 = vmatprep.subr.mxu0 0.0
    %272 = vmatpush1.msra.mxu0 %v69
    %273 = vmatprep.subr.mxu0 0.0
    %274 = vmatpush1.msra.mxu0 %v70
    %275 = vmatprep.subr.mxu0 0.0
    %276 = vmatpush1.msra.mxu0 %v71
    %277 = vmatprep.subr.mxu0 0.0
    %278 = vmatpush1.msra.mxu0 %v72
    %279 = vmatprep.subr.mxu0 0.0
    %280 = vmatpush1.msra.mxu0 0.0
    %281 = vmatprep.subr.mxu0 0.0
    %282 = vmatpush1.msra.mxu0 0.0
    %283 = vmatprep.subr.mxu0 0.0
    %284 = vmatpush1.msra.mxu0 0.0
    %285 = vmatprep.subr.mxu0 0.0
    %286 = vmatpush1.msra.mxu0 0.0
    %287 = vmatprep.subr.mxu0 0.0
    %288 = vmatpush1.msra.mxu0 0.0
    %289 = vmatprep.subr.mxu0 0.0
    %290 = vmatpush1.msra.mxu0 0.0
    %291 = vmatprep.subr.mxu0 0.0
    %292 = vmatpush1.msra.mxu0 0.0
    %293 = vmatprep.subr.mxu0 0.0
    %294 = vmatpush1.msra.mxu0 0.0
    %295 = vmatprep.subr.mxu0 0.0
    %296 = vmatpush1.msra.mxu0 0.0
    %297 = vmatprep.subr.mxu0 0.0
    %298 = vmatpush1.msra.mxu0 0.0
    %299 = vmatprep.subr.mxu0 0.0
    %300 = vmatpush1.msra.mxu0 0.0
    %301 = vmatprep.subr.mxu0 0.0
    %302 = vmatpush1.msra.mxu0 0.0
    %303 = vmatprep.subr.mxu0 0.0
    %304 = vmatpush1.msra.mxu0 0.0
    %305 = vmatprep.subr.mxu0 0.0
    %306 = vmatpush1.msra.mxu0 0.0
    %307 = vmatprep.subr.mxu0 0.0
    %308 = vmatpush1.msra.mxu0 0.0
    %309 = vmatprep.subr.mxu0 0.0
    %310 = vmatpush1.msra.mxu0 0.0
    %311 = vmatprep.mubr.f32.mxu0 0.0
    %312 = vmatmul.mubr.f32.gmra.mrb[0].mxu0 %v246
    %v313 = vpop.f32.mrb[0].mxu0
    %v314 = vadd.f32 %v174, %v313
    %v315 = vpop.f32.mrb[0].mxu0
    %316 = vdwg.mxu0
    %v317 = vtanh.pop %v314
    %v319 = vlaneseq
    %v320 = vshrl.u32 %v319, 7
    %v321 = vsub.s32 0, %v320
    %v322 = vrot.slane %v91, %v321
    %324 = vmatprep.subr.mxu0 0.0
    %325 = vmatpush1.msra.mxu0 %v73
    %326 = vmatprep.subr.mxu0 0.0
    %327 = vmatpush1.msra.mxu0 %v74
    %328 = vmatprep.subr.mxu0 0.0
    %329 = vmatpush1.msra.mxu0 %v75
    %330 = vmatprep.subr.mxu0 0.0
    %331 = vmatpush1.msra.mxu0 %v76
    %332 = vmatprep.subr.mxu0 0.0
    %333 = vmatpush1.msra.mxu0 %v77
    %334 = vmatprep.subr.mxu0 0.0
    %335 = vmatpush1.msra.mxu0 %v78
    %336 = vmatprep.subr.mxu0 0.0
    %337 = vmatpush1.msra.mxu0 %v79
    %338 = vmatprep.subr.mxu0 0.0
    %339 = vmatpush1.msra.mxu0 %v80
    %340 = vmatprep.subr.mxu0 0.0
    %341 = vmatpush1.msra.mxu0 %v81
    %342 = vmatprep.subr.mxu0 0.0
    %343 = vmatpush1.msra.mxu0 %v82
    %344 = vmatprep.subr.mxu0 0.0
    %345 = vmatpush1.msra.mxu0 %v83
    %346 = vmatprep.subr.mxu0 0.0
    %347 = vmatpush1.msra.mxu0 %v84
    %348 = vmatprep.subr.mxu0 0.0
    %349 = vmatpush1.msra.mxu0 %v85
    %350 = vmatprep.subr.mxu0 0.0
    %351 = vmatpush1.msra.mxu0 %v86
    %352 = vmatprep.subr.mxu0 0.0
    %353 = vmatpush1.msra.mxu0 %v87
    %354 = vmatprep.subr.mxu0 0.0
    %355 = vmatpush1.msra.mxu0 %v88
    %356 = vmatprep.subr.mxu0 0.0
    %357 = vmatpush1.msra.mxu0 0.0
    %358 = vmatprep.subr.mxu0 0.0
    %359 = vmatpush1.msra.mxu0 0.0
    %360 = vmatprep.subr.mxu0 0.0
    %361 = vmatpush1.msra.mxu0 0.0
    %362 = vmatprep.subr.mxu0 0.0
    %363 = vmatpush1.msra.mxu0 0.0
    %364 = vmatprep.subr.mxu0 0.0
    %365 = vmatpush1.msra.mxu0 0.0
    %366 = vmatprep.subr.mxu0 0.0
    %367 = vmatpush1.msra.mxu0 0.0
    %368 = vmatprep.subr.mxu0 0.0
    %369 = vmatpush1.msra.mxu0 0.0
    %370 = vmatprep.subr.mxu0 0.0
    %371 = vmatpush1.msra.mxu0 0.0
    %372 = vmatprep.subr.mxu0 0.0
    %373 = vmatpush1.msra.mxu0 0.0
    %374 = vmatprep.subr.mxu0 0.0
    %375 = vmatpush1.msra.mxu0 0.0
    %376 = vmatprep.subr.mxu0 0.0
    %377 = vmatpush1.msra.mxu0 0.0
    %378 = vmatprep.subr.mxu0 0.0
    %379 = vmatpush1.msra.mxu0 0.0
    %380 = vmatprep.subr.mxu0 0.0
    %381 = vmatpush1.msra.mxu0 0.0
    %382 = vmatprep.subr.mxu0 0.0
    %383 = vmatpush1.msra.mxu0 0.0
    %384 = vmatprep.subr.mxu0 0.0
    %385 = vmatpush1.msra.mxu0 0.0
    %386 = vmatprep.subr.mxu0 0.0
    %387 = vmatpush1.msra.mxu0 0.0
    %388 = vmatprep.mubr.f32.mxu0 0.0
    %389 = vmatmul.mubr.f32.gmra.mrb[0].mxu0 %v317
    %v390 = vpop.f32.mrb[0].mxu0
    %v391 = vadd.f32 %v322, %v390
    %v392 = vpop.f32.mrb[0].mxu0
    %393 = vdwg.mxu0
    %394 = vst [vmem:[#allocation7] sm:$0xff] %v391
    // Predicated region
    $region22: #{tpu_custom_call.1} parent=1 // pred_check
      _
    $region23: #{tpu_custom_call.1} parent=1 // pred_check_branch
      %396 = sbr.rel (0) target = $region25
    $region24: #{tpu_custom_call.1} parent=1 // pred_region
      %s398 = ssub.s32 128, 128
      %399 = vsyncadd [#allocation4], %s398
      %s401 = sshll.u32 [#allocation7], 4
      %s402 = int_to_ptr.vmem [resolvable:$true] %s401
      %404 = dma.vmem_to_hbm [thread:$0]  %s402, 128, %s3, [#allocation4]
    $region25: #{tpu_custom_call.1} parent=1 // pred_fallthru
      _
    // Predicated region
    $region26: #{tpu_custom_call.1} parent=1 // pred_check
      _
    $region27: #{tpu_custom_call.1} parent=1 // pred_check_branch
      %406 = sbr.rel (0) target = $region29
    $region28: #{tpu_custom_call.1} parent=1 // pred_region
      %407 = dma.done [#allocation4], 128
    $region29: #{tpu_custom_call.1} parent=1 // pred_fallthru
      _
    %408 = vsyncpa [#allocation3], 1
    %409 = vsyncpa [#allocation6], 1
    %410 = vsyncpa [#allocation4], 1

</llo_original>
